<compile_context>
chip_gen: v6e
topology: v6e:2x2x1
jax: 0.10.0
libtpu: 0.0.40
codegen_flags: <defaults>
</compile_context>

<pallas_src>
import functools
import math

import jax
import jax.numpy as jnp
from jax.experimental import pallas as pl
from jax.experimental.pallas import tpu as pltpu

_LANE = 128


def _round_up(x, m):
    return ((x + m - 1) // m) * m


def _vmem_capacity_bytes():
    """Physical VMEM per TensorCore (generation-aware, with safe fallbacks)."""
    try:
        info = pltpu.get_tpu_info()
        cap = getattr(info, "vmem_capacity_bytes", None)
        if cap:
            return int(cap)
    except Exception:
        pass
    try:
        kind = jax.devices()[0].device_kind.lower()
        if "v7" in kind:
            return 64 * 1024 * 1024
    except Exception:
        pass
    return 128 * 1024 * 1024


def _num_tensorcores():
    """2 on 2-TensorCore chips (v7x / v4 / v5p megacore), else 1."""
    try:
        kind = jax.devices()[0].device_kind.lower()
    except Exception:
        return 1
    return 2 if any(t in kind for t in ("v7", "v4", "v5p")) else 1


def _has_bf16_vector_units():
    """v6e/v7x VPU+EUP support bf16 elementwise; v2-v5e do not."""
    try:
        kind = jax.devices()[0].device_kind.lower()
    except Exception:
        return True
    return not any(t in kind for t in ("v2", "v3", "v4", "v5"))


@functools.lru_cache(maxsize=1)
def _single_buffer_supported():
    """Probe once whether pl.Buffered(1) single-buffering lowers/runs here."""
    if not hasattr(pl, "Buffered"):
        return False

    def _probe_kernel(x_ref, o_ref):
        o_ref[...] = x_ref[...] + 1.0

    try:
        fn = pl.pallas_call(
            _probe_kernel,
            out_shape=jax.ShapeDtypeStruct((8, 128), jnp.float32),
            grid=(1,),
            in_specs=[pl.BlockSpec((8, 128), lambda i: (0, 0),
                                   pipeline_mode=pl.Buffered(1))],
            out_specs=pl.BlockSpec((8, 128), lambda i: (0, 0)),
        )
        jax.block_until_ready(fn(jnp.zeros((8, 128), jnp.float32)))
        return True
    except Exception:
        return False


def _mlp_kernel(x_ref, w1_ref, b1_ref, w2_ref, b2_ref, o_ref, acc_ref, *,
                approx_gelu, low_precision_act):
    """One (token-tile, hidden-tile) grid step of Linear -> GELU -> Linear."""
    k = pl.program_id(1)

    @pl.when(k == 0)
    def _init():
        acc_ref[...] = jnp.zeros_like(acc_ref)

    # Linear 1: native-dtype operands on the MXU, f32 accumulation.
    h = jnp.dot(x_ref[...], w1_ref[...], preferred_element_type=jnp.float32)
    if low_precision_act:
        # bias-add + GELU in the compute dtype (bf16 VPU/EUP on v6e/v7x):
        # halves elementwise vreg work and the live (tm, tk) intermediate.
        h = h.astype(w2_ref.dtype)
    h = h + b1_ref[...]
    if approx_gelu:
        # tanh-approx GELU -> EUP slot instead of a long VALU erf polynomial.
        h = jax.nn.gelu(h, approximate=True)
    else:
        # Exact erf GELU (torch.nn.GELU() default).
        h = 0.5 * h * (1.0 + jax.lax.erf(h * (1.0 / math.sqrt(2.0))))
    # Dropout (do1 / do2): identity in eval mode.
    # TODO(synk): training-mode dropout (pltpu.prng_random_bits) not implemented.

    # Linear 2 chunk, accumulated in f32 over the hidden grid axis.
    acc_ref[...] += jnp.dot(h.astype(w2_ref.dtype), w2_ref[...],
                            preferred_element_type=jnp.float32)

    @pl.when(k == pl.num_programs(1) - 1)
    def _finalize():
        o_ref[...] = (acc_ref[...] + b2_ref[...]).astype(o_ref.dtype)


def _choose_tiles(n_tokens, dim_p, hidden_p, c_bytes, o_bytes, desired_tm,
                  budget, min_grid_steps, single_ok):
    """Pick (token_tile, hidden_tile) fitting a generation-aware VMEM budget."""
    granule = {4: 8, 2: 16, 1: 32}.get(c_bytes, 8)

    def footprint(tm, tk):
        if tk == hidden_p:                           # resident weights
            w = (1 if single_ok else 2) * 2 * dim_p * hidden_p * c_bytes
        else:                                        # streamed, double-buffered
            w = 2 * 2 * dim_p * tk * c_bytes
        w += 8 * (dim_p + hidden_p)                  # biases (generous)
        act = 2 * tm * dim_p * (c_bytes + o_bytes)   # x / out tiles, 2-buffered
        act += tm * dim_p * 4                        # f32 accumulator scratch
        act += tm * tk * (4 + min(c_bytes, 4))       # f32 h (+ low-prec copy)
        return w + act

    tm = max(granule, min(_round_up(desired_tm, granule),
                          _round_up(n_tokens, granule)))

    def best_tk(tm_):
        if footprint(tm_, hidden_p) <= budget:
            return hidden_p                          # fully resident weights
        best = None
        tk = _LANE
        while tk < hidden_p:
            if hidden_p % tk == 0 and footprint(tm_, tk) <= budget:
                best = tk
            tk += _LANE
        return best

    tk = best_tk(tm)
    while tk is None and tm > granule:
        tm = max(granule, _round_up(tm // 2, granule))
        tk = best_tk(tm)
    if tk is None:
        tk = _LANE                                   # last resort (huge dim)

    # Keep >=2 token tiles on 2-TensorCore chips so both cores get work; never
    # shrink below one 256-wide MXU M tile for this.
    while (min_grid_steps > 1 and tm > 256
           and pl.cdiv(n_tokens, tm) < min_grid_steps):
        tm = max(granule, _round_up(tm // 2, granule))
    return tm, tk


def _make_mlp_call(n_tokens, dim_p, hidden_p, tm, tk, compute_dtype, out_dtype,
                   approx_gelu, low_precision_act, vmem_limit, single_ok):
    num_m = pl.cdiv(n_tokens, tm)
    num_k = hidden_p // tk
    resident = num_k == 1

    def spec(shape, index_map, single):
        if single and single_ok:
            return pl.BlockSpec(shape, index_map, pipeline_mode=pl.Buffered(1))
        return pl.BlockSpec(shape, index_map)

    c_bytes = jnp.dtype(compute_dtype).itemsize
    o_bytes = jnp.dtype(out_dtype).itemsize
    weight_bytes = 2 * dim_p * hidden_p * c_bytes
    cost = pl.CostEstimate(
        flops=4 * n_tokens * dim_p * hidden_p,
        transcendentals=n_tokens * hidden_p if approx_gelu else 0,
        bytes_accessed=(n_tokens * dim_p * (c_bytes + o_bytes)
                        + (1 if resident else num_m) * weight_bytes
                        + 4 * (dim_p + hidden_p)),
    )

    kernel = functools.partial(_mlp_kernel, approx_gelu=approx_gelu,
                               low_precision_act=low_precision_act)

    return pl.pallas_call(
        kernel,
        out_shape=jax.ShapeDtypeStruct((n_tokens, dim_p), out_dtype),
        grid_spec=pltpu.PrefetchScalarGridSpec(
            num_scalar_prefetch=0,
            grid=(num_m, num_k),
            in_specs=[
                # x token tile: reused across the hidden axis; default double
                # buffering prefetches the next token tile under the last k.
                pl.BlockSpec((tm, dim_p), lambda i, k: (i, 0)),
                # W1 / b1 / W2: resident + single-buffered when hidden fits,
                # otherwise streamed hidden chunks with default buffering.
                spec((dim_p, tk), lambda i, k: (0, k), single=resident),
                spec((1, tk), lambda i, k: (0, k), single=resident),
                spec((tk, dim_p), lambda i, k: (k, 0), single=resident),
                spec((1, dim_p), lambda i, k: (0, 0), single=True),
            ],
            out_specs=pl.BlockSpec((tm, dim_p), lambda i, k: (i, 0)),
            scratch_shapes=[pltpu.VMEM((tm, dim_p), jnp.float32)],
        ),
        compiler_params=pltpu.CompilerParams(
            dimension_semantics=("parallel", "arbitrary"),
            vmem_limit_bytes=vmem_limit,
        ),
        cost_estimate=cost,
    )


class PallasMLPBlock:
    """ViT MLPBlock forward (eval mode) as a single fused Pallas TPU kernel.

    Weights/biases are cast to the compute dtype and lane-padded ONCE at
    construction; per-(batch, seq, dtype) jitted callables are cached.
    """

    def __init__(self, w1, b1, w2, b2, *, compute_dtype=None,
                 approximate_gelu=None, block_m=None):
        dim, hidden = w1.shape
        assert w2.shape == (hidden, dim), (w1.shape, w2.shape)
        self.dim, self.hidden = dim, hidden
        self.compute_dtype = jnp.dtype(
            compute_dtype if compute_dtype is not None else w1.dtype)
        low_prec = self.compute_dtype.itemsize < 4
        self.low_precision_act = bool(low_prec and _has_bf16_vector_units())
        self.approx_gelu = bool(low_prec if approximate_gelu is None
                                else approximate_gelu)
        self.block_m = block_m

        self.dim_p = _round_up(dim, _LANE)
        self.hidden_p = _round_up(hidden, _LANE)

        cdt = self.compute_dtype
        b1_dtype = cdt if self.low_precision_act else jnp.float32
        w1p = jnp.pad(jnp.asarray(w1, cdt),
                      ((0, self.dim_p - dim), (0, self.hidden_p - hidden)))
        w2p = jnp.pad(jnp.asarray(w2, cdt),
                      ((0, self.hidden_p - hidden), (0, self.dim_p - dim)))
        b1p = jnp.pad(jnp.asarray(b1, b1_dtype),
                      (0, self.hidden_p - hidden)).reshape(1, self.hidden_p)
        b2p = jnp.pad(jnp.asarray(b2, jnp.float32),
                      (0, self.dim_p - dim)).reshape(1, self.dim_p)
        self.w1 = jax.block_until_ready(jax.device_put(w1p))
        self.b1 = jax.block_until_ready(jax.device_put(b1p))
        self.w2 = jax.block_until_ready(jax.device_put(w2p))
        self.b2 = jax.block_until_ready(jax.device_put(b2p))

        self._vmem_phys = _vmem_capacity_bytes()
        self._min_steps = 2 if _num_tensorcores() > 1 else 1
        self._fns = {}

    def __call__(self, x):
        B, S, dim = x.shape
        assert dim == self.dim, (dim, self.dim)
        key = (B, S, str(jnp.dtype(x.dtype)))
        fn = self._fns.get(key)
        if fn is None:
            fn = self._build(B, S, jnp.dtype(x.dtype))
            self._fns[key] = fn
        return fn(x, self.w1, self.b1, self.w2, self.b2)

    def _build(self, B, S, x_dtype):
        N, dim, dim_p, hidden_p = B * S, self.dim, self.dim_p, self.hidden_p
        cdt = self.compute_dtype
        out_dtype = x_dtype
        c_bytes = cdt.itemsize
        o_bytes = out_dtype.itemsize

        budget = int(self._vmem_phys * 0.78)    # ~100 MiB v5e/v6e, ~50 MiB v7x
        desired = 512 if self.block_m is None else self.block_m
        single_ok = _single_buffer_supported()
        tm, tk = _choose_tiles(N, dim_p, hidden_p, c_bytes, o_bytes, desired,
                               budget, self._min_steps, single_ok)

        resident = tk == hidden_p
        w_buf = (1 if (resident and single_ok) else 2) * 2 * dim_p * tk * c_bytes
        est = (w_buf
               + 2 * tm * dim_p * (c_bytes + o_bytes)
               + tm * dim_p * 4
               + tm * tk * (4 + min(c_bytes, 4))
               + 8 * (dim_p + hidden_p)
               + (4 << 20))                     # compiler scratch slack
        cap = min(self._vmem_phys - (8 << 20), 100 << 20)
        vmem_limit = int(min(max(est, min(32 << 20, cap)), cap))

        call = _make_mlp_call(N, dim_p, hidden_p, tm, tk, cdt, out_dtype,
                              self.approx_gelu, self.low_precision_act,
                              vmem_limit, single_ok)

        @jax.jit
        def fn(x, w1, b1, w2, b2):
            x2d = x.reshape(N, dim).astype(cdt)
            if dim_p != dim:
                x2d = jnp.pad(x2d, ((0, 0), (0, dim_p - dim)))
            out2d = call(x2d, w1, b1, w2, b2)
            return out2d[:, :dim].reshape(B, S, dim)

        return fn


def _xavier_uniform(key, fan_in, fan_out, dtype=jnp.float32):
    # matches torch.nn.init.xavier_uniform_ for a Linear weight (out, in)
    limit = math.sqrt(6.0 / (fan_in + fan_out))
    w = jax.random.uniform(key, (fan_out, fan_in), dtype=dtype,
                           minval=-limit, maxval=limit)
    return w.T  # (in, out) for x @ W


def init_mlp_params(key, dim, hidden_dim, dtype=jnp.float32):
    k1, k2, k3, k4 = jax.random.split(key, 4)
    w1 = _xavier_uniform(k1, dim, hidden_dim, dtype)          # (dim, hidden)
    b1 = 1e-6 * jax.random.normal(k2, (hidden_dim,), dtype)   # std=1e-6
    w2 = _xavier_uniform(k3, hidden_dim, dim, dtype)          # (hidden, dim)
    b2 = 1e-6 * jax.random.normal(k4, (dim,), dtype)
    return w1, b1, w2, b2


def _reference(x, w1, b1, w2, b2):
    h = x @ w1 + b1
    h = jax.nn.gelu(h, approximate=False)
    return h @ w2 + b2


if __name__ == "__main__":
    key = jax.random.PRNGKey(0)
    kx, kp = jax.random.split(key)

    B, S, dim, hidden_dim = 2, 8, 32, 64
    x = jax.random.normal(kx, (B, S, dim), dtype=jnp.float32)
    w1, b1, w2, b2 = init_mlp_params(kp, dim, hidden_dim)

    ref = _reference(x, w1, b1, w2, b2)

    # f32 path: exact erf GELU, matches torch.nn.GELU() default.
    blk = PallasMLPBlock(w1, b1, w2, b2)
    out = jax.block_until_ready(blk(x))
    assert out.shape == (B, S, dim), out.shape
    assert jnp.allclose(out, ref, atol=1e-5, rtol=1e-5), \
        float(jnp.max(jnp.abs(out - ref)))

    # bf16 MXU path (production config): bf16 elementwise + tanh-GELU on the
    # EUP; looser tolerance from bf16 rounding / GELU approximation.
    blk_bf16 = PallasMLPBlock(w1, b1, w2, b2, compute_dtype=jnp.bfloat16)
    out_bf16 = jax.block_until_ready(blk_bf16(x))
    assert out_bf16.shape == (B, S, dim), out_bf16.shape
    assert jnp.allclose(out_bf16, ref, atol=5e-2, rtol=5e-2), \
        float(jnp.max(jnp.abs(out_bf16 - ref)))

    print("KERNEL_OK")
</pallas_src>

<mosaic_0001>
module attributes {stable_mosaic.version = 11 : i64} {
  func.func @_probe_kernel(%arg0: i32, %arg1: memref<8x128xf32, #tpu.memory_space<vmem>>, %arg2: memref<8x128xf32, #tpu.memory_space<vmem>>) attributes {dimension_semantics = [#tpu.dimension_semantics<arbitrary>], iteration_bounds = array<i64: 1>, scalar_prefetch = 0 : i64, scratch_operands = 0 : i64, tpu.core_type = #tpu.core_type<tc>, window_params = [{pipeline_mode = #tpu.pipeline_mode<synchronous>, transform_indices = @transform_0, window_bounds = array<i64: 8, 128>}, {pipeline_mode = #tpu.pipeline_mode<synchronous>, transform_indices = @transform_1, window_bounds = array<i64: 8, 128>}]} {
    %c0 = arith.constant 0 : index
    %c0_0 = arith.constant 0 : index
    %0 = vector.load %arg1[%c0, %c0_0] : memref<8x128xf32, #tpu.memory_space<vmem>>, vector<8x128xf32>
    %cst = arith.constant 1.000000e+00 : f32
    %1 = vector.broadcast %cst : f32 to vector<8x128xf32>
    %2 = arith.addf %0, %1 : vector<8x128xf32>
    %c0_1 = arith.constant 0 : index
    %c0_2 = arith.constant 0 : index
    %3 = vector.load %arg2[%c0_1, %c0_2] : memref<8x128xf32, #tpu.memory_space<vmem>>, vector<8x128xf32>
    tpu.vector_store %arg2[%c0_1, %c0_2], %2 {strides = array<i32>} : memref<8x128xf32, #tpu.memory_space<vmem>>, vector<8x128xf32>,
    return
  }
  func.func @transform_0(%arg0: i32) -> (i32, i32) {
    %c0_i32 = arith.constant 0 : i32
    %c0_i32_0 = arith.constant 0 : i32
    %c0_i32_1 = arith.constant 0 : i32
    return %c0_i32, %c0_i32_0 : i32, i32
  }
  func.func @transform_1(%arg0: i32) -> (i32, i32) {
    %c0_i32 = arith.constant 0 : i32
    %c0_i32_0 = arith.constant 0 : i32
    %c0_i32_1 = arith.constant 0 : i32
    return %c0_i32, %c0_i32_0 : i32, i32
  }
}

module attributes {stable_mosaic.version = 11 : i64} {
  func.func @_mlp_kernel(%arg0: i32, %arg1: i32, %arg2: memref<16x128xf32, #tpu.memory_space<vmem>>, %arg3: memref<128x128xf32, #tpu.memory_space<vmem>>, %arg4: memref<1x128xf32, #tpu.memory_space<vmem>>, %arg5: memref<128x128xf32, #tpu.memory_space<vmem>>, %arg6: memref<1x128xf32, #tpu.memory_space<vmem>>, %arg7: memref<16x128xf32, #tpu.memory_space<vmem>>, %arg8: memref<16x128xf32, #tpu.memory_space<vmem>>) attributes {dimension_semantics = [#tpu.dimension_semantics<parallel>, #tpu.dimension_semantics<arbitrary>], iteration_bounds = array<i64: 1, 1>, scalar_prefetch = 0 : i64, scratch_operands = 1 : i64, tpu.core_type = #tpu.core_type<tc>, window_params = [{transform_indices = @transform_0, window_bounds = array<i64: 16, 128>}, {transform_indices = @transform_1, window_bounds = array<i64: 128, 128>}, {transform_indices = @transform_2, window_bounds = array<i64: 1, 128>}, {transform_indices = @transform_3, window_bounds = array<i64: 128, 128>}, {pipeline_mode = #tpu.pipeline_mode<synchronous>, transform_indices = @transform_4, window_bounds = array<i64: 1, 128>}, {transform_indices = @transform_5, window_bounds = array<i64: 16, 128>}]} {
    %c0_i32 = arith.constant 0 : i32
    %0 = arith.cmpi eq, %arg1, %c0_i32 : i32
    %1 = arith.extui %0 : i1 to i32
    %c0_i32_0 = arith.constant 0 : i32
    %2 = arith.cmpi ne, %1, %c0_i32_0 : i32
    scf.if %2 {
      %cst_18 = arith.constant 0.000000e+00 : f32
      %25 = vector.broadcast %cst_18 : f32 to vector<16x128xf32>
      %c0_19 = arith.constant 0 : index
      %c0_20 = arith.constant 0 : index
      %26 = vector.load %arg8[%c0_19, %c0_20] : memref<16x128xf32, #tpu.memory_space<vmem>>, vector<16x128xf32>
      tpu.vector_store %arg8[%c0_19, %c0_20], %25 {strides = array<i32>} : memref<16x128xf32, #tpu.memory_space<vmem>>, vector<16x128xf32>,
    } else {
    }
    %c0 = arith.constant 0 : index
    %c0_1 = arith.constant 0 : index
    %3 = vector.load %arg2[%c0, %c0_1] : memref<16x128xf32, #tpu.memory_space<vmem>>, vector<16x128xf32>
    %c0_2 = arith.constant 0 : index
    %c0_3 = arith.constant 0 : index
    %4 = vector.load %arg3[%c0_2, %c0_3] : memref<128x128xf32, #tpu.memory_space<vmem>>, vector<128x128xf32>
    %cst = arith.constant dense<0.000000e+00> : vector<16x128xf32>
    %5 = tpu.matmul %3, %4, %cst {dimension_numbers = #tpu.dot_dimension_numbers<[1], [0], [0], [1], [0, 0, 1, 1], [], []>} : vector<16x128xf32>, vector<128x128xf32>, vector<16x128xf32> -> vector<16x128xf32>
    %c0_4 = arith.constant 0 : index
    %c0_5 = arith.constant 0 : index
    %6 = vector.load %arg4[%c0_4, %c0_5] : memref<1x128xf32, #tpu.memory_space<vmem>>, vector<1x128xf32>
    %7 = vector.broadcast %6 : vector<1x128xf32> to vector<16x128xf32>
    %8 = arith.addf %5, %7 : vector<16x128xf32>
    %cst_6 = arith.constant 5.000000e-01 : f32
    %9 = vector.broadcast %cst_6 : f32 to vector<16x128xf32>
    %10 = arith.mulf %9, %8 : vector<16x128xf32>
    %cst_7 = arith.constant 0.707106769 : f32
    %11 = vector.broadcast %cst_7 : f32 to vector<16x128xf32>
    %12 = arith.mulf %8, %11 : vector<16x128xf32>
    %13 = math.erf %12 : vector<16x128xf32>
    %cst_8 = arith.constant 1.000000e+00 : f32
    %14 = vector.broadcast %cst_8 : f32 to vector<16x128xf32>
    %15 = arith.addf %14, %13 : vector<16x128xf32>
    %16 = arith.mulf %10, %15 : vector<16x128xf32>
    %c0_9 = arith.constant 0 : index
    %c0_10 = arith.constant 0 : index
    %17 = vector.load %arg8[%c0_9, %c0_10] : memref<16x128xf32, #tpu.memory_space<vmem>>, vector<16x128xf32>
    %c0_11 = arith.constant 0 : index
    %c0_12 = arith.constant 0 : index
    %18 = vector.load %arg5[%c0_11, %c0_12] : memref<128x128xf32, #tpu.memory_space<vmem>>, vector<128x128xf32>
    %cst_13 = arith.constant dense<0.000000e+00> : vector<16x128xf32>
    %19 = tpu.matmul %16, %18, %cst_13 {dimension_numbers = #tpu.dot_dimension_numbers<[1], [0], [0], [1], [0, 0, 1, 1], [], []>} : vector<16x128xf32>, vector<128x128xf32>, vector<16x128xf32> -> vector<16x128xf32>
    %20 = arith.addf %17, %19 : vector<16x128xf32>
    %c0_14 = arith.constant 0 : index
    %c0_15 = arith.constant 0 : index
    %21 = vector.load %arg8[%c0_14, %c0_15] : memref<16x128xf32, #tpu.memory_space<vmem>>, vector<16x128xf32>
    tpu.vector_store %arg8[%c0_14, %c0_15], %20 {strides = array<i32>} : memref<16x128xf32, #tpu.memory_space<vmem>>, vector<16x128xf32>,
    %c0_i32_16 = arith.constant 0 : i32
    %22 = arith.cmpi eq, %arg1, %c0_i32_16 : i32
    %23 = arith.extui %22 : i1 to i32
    %c0_i32_17 = arith.constant 0 : i32
    %24 = arith.cmpi ne, %23, %c0_i32_17 : i32
    scf.if %24 {
      %c0_18 = arith.constant 0 : index
      %c0_19 = arith.constant 0 : index
      %25 = vector.load %arg8[%c0_18, %c0_19] : memref<16x128xf32, #tpu.memory_space<vmem>>, vector<16x128xf32>
      %c0_20 = arith.constant 0 : index
      %c0_21 = arith.constant 0 : index
      %26 = vector.load %arg6[%c0_20, %c0_21] : memref<1x128xf32, #tpu.memory_space<vmem>>, vector<1x128xf32>
      %27 = vector.broadcast %26 : vector<1x128xf32> to vector<16x128xf32>
      %28 = arith.addf %25, %27 : vector<16x128xf32>
      %c0_22 = arith.constant 0 : index
      %c0_23 = arith.constant 0 : index
      %29 = vector.load %arg7[%c0_22, %c0_23] : memref<16x128xf32, #tpu.memory_space<vmem>>, vector<16x128xf32>
      tpu.vector_store %arg7[%c0_22, %c0_23], %28 {strides = array<i32>} : memref<16x128xf32, #tpu.memory_space<vmem>>, vector<16x128xf32>,
    } else {
    }
    return
  }
  func.func @transform_0(%arg0: i32, %arg1: i32) -> (i32, i32) {
    %c0_i32 = arith.constant 0 : i32
    %c0_i32_0 = arith.constant 0 : i32
    return %arg0, %c0_i32 : i32, i32
  }
  func.func @transform_1(%arg0: i32, %arg1: i32) -> (i32, i32) {
    %c0_i32 = arith.constant 0 : i32
    %c0_i32_0 = arith.constant 0 : i32
    return %c0_i32, %arg1 : i32, i32
  }
  func.func @transform_2(%arg0: i32, %arg1: i32) -> (i32, i32) {
    %c0_i32 = arith.constant 0 : i32
    %c0_i32_0 = arith.constant 0 : i32
    return %c0_i32, %arg1 : i32, i32
  }
  func.func @transform_3(%arg0: i32, %arg1: i32) -> (i32, i32) {
    %c0_i32 = arith.constant 0 : i32
    %c0_i32_0 = arith.constant 0 : i32
    return %arg1, %c0_i32 : i32, i32
  }
  func.func @transform_4(%arg0: i32, %arg1: i32) -> (i32, i32) {
    %c0_i32 = arith.constant 0 : i32
    %c0_i32_0 = arith.constant 0 : i32
    %c0_i32_1 = arith.constant 0 : i32
    return %c0_i32, %c0_i32_0 : i32, i32
  }
  func.func @transform_5(%arg0: i32, %arg1: i32) -> (i32, i32) {
    %c0_i32 = arith.constant 0 : i32
    %c0_i32_0 = arith.constant 0 : i32
    return %arg0, %c0_i32 : i32, i32
  }
}

</mosaic_0001>

<llo_original>
// kernel: tpu_custom_call.1
$region0: #{tpu_custom_call.1}
  #allocation0 [shape = 'u32[]', space=smem, size = 0x4, offset = 0x4, fixed_abs, tag = 'smem constant byte address 0x4 - core index']
  #allocation1 [shape = 'u32[144,128]{1,0:T(1,128)}', space=vmem, size = 0x12000, scoped, tag = 'internal scratch']
  %s0 = inlined_call_operand.hbm [shape: f32[8,128], index: 0, kind: input, shape index: {}]
  %s1 = inlined_call_operand.hbm [shape: f32[8,128], index: 1, kind: output, shape index: {}]
  %s2 = sld [smem:[#allocation0]]
  $region18: #{tpu_custom_call.1} parent=0
    _
  %s4 = ssub.s32 1, %s2
  %s5 = scalar_select 0, %s4, %s2
  $region1: #{tpu_custom_call.1} parent=0
    #allocation2 [shape = 'u8[4096]{0}', space=vmem, size = 0x1000, scoped, tag = 'input window, operand 0, single buffered']
    #allocation3 [shape = 's32[1]{0}', space=sflag, size = 0x4, scoped, tag = 'scoped memory for tpu_custom_call.1']
    #allocation4 [shape = 's32[1]{0}', space=sflag, size = 0x4, scoped, tag = 'scoped memory for tpu_custom_call.1']
    #allocation5 [shape = 'u8[4096]{0}', space=vmem, size = 0x1000, scoped, tag = 'output window, operand 0, single buffered']
    %6 = vsyncpa [#allocation3], 0
    %7 = vsyncpa [#allocation4], 0
    // Predicated region
    $region2: #{tpu_custom_call.1} parent=1 // pred_check
      _
    $region3: #{tpu_custom_call.1} parent=1 // pred_check_branch
      %9 = sbr.rel (0) target = $region5
    $region4: #{tpu_custom_call.1} parent=1 // pred_region
      %s11 = ssub.s32 128, 128
      %12 = vsyncadd [#allocation3], %s11
      %s14 = sshll.u32 [#allocation2], 4
      %s15 = int_to_ptr.vmem [resolvable:$true] %s14
      %17 = dma.hbm_to_vmem [thread:$0]  %s0, 128, %s15, [#allocation3]
    $region5: #{tpu_custom_call.1} parent=1 // pred_fallthru
      _
    // Predicated region
    $region6: #{tpu_custom_call.1} parent=1 // pred_check
      _
    $region7: #{tpu_custom_call.1} parent=1 // pred_check_branch
      %19 = sbr.rel (0) target = $region9
    $region8: #{tpu_custom_call.1} parent=1 // pred_region
      %20 = dma.done [#allocation3], 128
    $region9: #{tpu_custom_call.1} parent=1 // pred_fallthru
      _
    %v21 = vld [vmem:[#allocation2] sm:$0xff]
    %v22 = vadd.f32 %v21, 1.0
    %23 = vst [vmem:[#allocation5] sm:$0xff] %v22
    // Predicated region
    $region10: #{tpu_custom_call.1} parent=1 // pred_check
      _
    $region11: #{tpu_custom_call.1} parent=1 // pred_check_branch
      %25 = sbr.rel (0) target = $region13
    $region12: #{tpu_custom_call.1} parent=1 // pred_region
      %s27 = ssub.s32 128, 128
      %28 = vsyncadd [#allocation4], %s27
      %s30 = sshll.u32 [#allocation5], 4
      %s31 = int_to_ptr.vmem [resolvable:$true] %s30
      %33 = dma.vmem_to_hbm [thread:$0]  %s31, 128, %s1, [#allocation4]
    $region13: #{tpu_custom_call.1} parent=1 // pred_fallthru
      _
    // Predicated region
    $region14: #{tpu_custom_call.1} parent=1 // pred_check
      _
    $region15: #{tpu_custom_call.1} parent=1 // pred_check_branch
      %35 = sbr.rel (0) target = $region17
    $region16: #{tpu_custom_call.1} parent=1 // pred_region
      %36 = dma.done [#allocation4], 128
    $region17: #{tpu_custom_call.1} parent=1 // pred_fallthru
      _
    %37 = vsyncpa [#allocation3], 1
    %38 = vsyncpa [#allocation4], 1

// kernel: fn.1
$region0: #{fn.1}
  #allocation0 [shape = 'u32[]', space=smem, size = 0x4, offset = 0x4, fixed_abs, tag = 'smem constant byte address 0x4 - core index']
  #allocation1 [shape = 'u32[144,128]{1,0:T(1,128)}', space=vmem, size = 0x12000, scoped, tag = 'internal scratch']
  #allocation2 [shape = 'f32[16,128]{1,0:T(8,128)}', space=vmem, size = 0x2000, scoped, tag = 'scratch operand']
  %s0 = inlined_call_operand.vmem [shape: f32[16,128], index: 0, kind: input, shape index: {}]
  %s1 = inlined_call_operand.hbm [shape: f32[128,128], index: 1, kind: input, shape index: {}]
  %s2 = inlined_call_operand.vmem [shape: f32[1,128], index: 2, kind: input, shape index: {}]
  %s3 = inlined_call_operand.hbm [shape: f32[128,128], index: 3, kind: input, shape index: {}]
  %s4 = inlined_call_operand.vmem [shape: f32[1,128], index: 4, kind: input, shape index: {}]
  %s5 = inlined_call_operand.vmem [shape: f32[16,128], index: 5, kind: output, shape index: {}]
  %s6 = sld [smem:[#allocation0]]
  $region46: #{fn.1} parent=0
    _
  %s8 = ssub.s32 1, %s6
  %s9 = scalar_select 0, %s8, %s6
  $region1: #{fn.1} parent=0
    #allocation3 [shape = 'u8[65536]{0}', space=vmem, size = 0x10000, scoped, tag = 'input window, operand 1, single buffered']
    #allocation4 [shape = 's32[1]{0}', space=sflag, size = 0x4, scoped, tag = 'scoped memory for fn.1']
    #allocation5 [shape = 'u8[65536]{0}', space=vmem, size = 0x10000, scoped, tag = 'input window, operand 3, single buffered']
    #allocation6 [shape = 's32[1]{0}', space=sflag, size = 0x4, scoped, tag = 'scoped memory for fn.1']
    %10 = vsyncpa [#allocation4], 0
    %11 = vsyncpa [#allocation6], 0
    // Predicated region
    $region2: #{fn.1} parent=1 // pred_check
      _
    $region3: #{fn.1} parent=1 // pred_check_branch
      %13 = sbr.rel (0) target = $region5
    $region4: #{fn.1} parent=1 // pred_region
      _
    $region5: #{fn.1} parent=1 // pred_fallthru
      _
    // Predicated region
    $region6: #{fn.1} parent=1 // pred_check
      _
    $region7: #{fn.1} parent=1 // pred_check_branch
      %15 = sbr.rel (0) target = $region9
    $region8: #{fn.1} parent=1 // pred_region
      %s17 = ssub.s32 2048, 2048
      %18 = vsyncadd [#allocation4], %s17
      %s19 = sshll.u32 [#allocation3], 4
      %s20 = int_to_ptr.vmem [resolvable:$true] %s19
      %25 = dma.hbm_to_vmem [thread:$0]  %s1, 2048, %s20, [#allocation4], 128, 128, 8
    $region9: #{fn.1} parent=1 // pred_fallthru
      _
    // Predicated region
    $region10: #{fn.1} parent=1 // pred_check
      _
    $region11: #{fn.1} parent=1 // pred_check_branch
      %27 = sbr.rel (0) target = $region13
    $region12: #{fn.1} parent=1 // pred_region
      _
    $region13: #{fn.1} parent=1 // pred_fallthru
      _
    // Predicated region
    $region14: #{fn.1} parent=1 // pred_check
      _
    $region15: #{fn.1} parent=1 // pred_check_branch
      %29 = sbr.rel (0) target = $region17
    $region16: #{fn.1} parent=1 // pred_region
      %s31 = ssub.s32 2048, 2048
      %32 = vsyncadd [#allocation6], %s31
      %s33 = sshll.u32 [#allocation5], 4
      %s34 = int_to_ptr.vmem [resolvable:$true] %s33
      %39 = dma.hbm_to_vmem [thread:$0]  %s3, 2048, %s34, [#allocation6], 128, 128, 8
    $region17: #{fn.1} parent=1 // pred_fallthru
      _
    // Predicated region
    $region18: #{fn.1} parent=1 // pred_check
      _
    $region19: #{fn.1} parent=1 // pred_check_branch
      %41 = sbr.rel (0) target = $region21
    $region20: #{fn.1} parent=1 // pred_region
      _
    $region21: #{fn.1} parent=1 // pred_fallthru
      _
    // Predicated region
    $region22: #{fn.1} parent=1 // pred_check
      _
    $region23: #{fn.1} parent=1 // pred_check_branch
      %43 = sbr.rel (0) target = $region25
    $region24: #{fn.1} parent=1 // pred_region
      %44 = dma.done [#allocation4], 2048
    $region25: #{fn.1} parent=1 // pred_fallthru
      _
    // Predicated region
    $region26: #{fn.1} parent=1 // pred_check
      _
    $region27: #{fn.1} parent=1 // pred_check_branch
      %46 = sbr.rel (0) target = $region29
    $region28: #{fn.1} parent=1 // pred_region
      %47 = dma.done [#allocation6], 2048
    $region29: #{fn.1} parent=1 // pred_fallthru
      _
    %p48 = scmp.eq.s32.totalorder 0, 0
    // Predicated region
    $region30: #{fn.1} parent=1 // pred_check
      %p49 = pneg %p48
    $region31: #{fn.1} parent=1 // pred_check_branch
      %51 = sbr.rel (%p49) target = $region33
    $region32: #{fn.1} parent=1 // pred_region
      %52 = vst [vmem:[#allocation2] sm:$0xff] 0.0
      %53 = vst [vmem:[#allocation2 + $0x8] sm:$0xff] 0.0
    $region33: #{fn.1} parent=1 // pred_fallthru
      _
    %v54 = vld [vmem:[%s0] sm:$0xff]
    %v55 = vld [vmem:[%s0 + $0x8] sm:$0xff]
    %v56 = vld [vmem:[#allocation3] sm:$0xff]
    %v57 = vld [vmem:[#allocation3 + $0x8] sm:$0xff]
    %v58 = vld [vmem:[#allocation3 + $0x10] sm:$0xff]
    %v59 = vld [vmem:[#allocation3 + $0x18] sm:$0xff]
    %v60 = vld [vmem:[#allocation3 + $0x20] sm:$0xff]
    %v61 = vld [vmem:[#allocation3 + $0x28] sm:$0xff]
    %v62 = vld [vmem:[#allocation3 + $0x30] sm:$0xff]
    %v63 = vld [vmem:[#allocation3 + $0x38] sm:$0xff]
    %v64 = vld [vmem:[#allocation3 + $0x40] sm:$0xff]
    %v65 = vld [vmem:[#allocation3 + $0x48] sm:$0xff]
    %v66 = vld [vmem:[#allocation3 + $0x50] sm:$0xff]
    %v67 = vld [vmem:[#allocation3 + $0x58] sm:$0xff]
    %v68 = vld [vmem:[#allocation3 + $0x60] sm:$0xff]
    %v69 = vld [vmem:[#allocation3 + $0x68] sm:$0xff]
    %v70 = vld [vmem:[#allocation3 + $0x70] sm:$0xff]
    %v71 = vld [vmem:[#allocation3 + $0x78] sm:$0xff]
    %v72 = vld [vmem:[%s2] sm:$0x1]
    %v74 = vlaneseq
    %v75 = vshrl.u32 %v74, 7
    %v76 = vsub.s32 0, %v75
    %v77 = vrot.slane %v72, %v76
    %79 = vmatprep.subr.mxu0 0.0
    %80 = vmatpush1.msra.mxu0 %v71
    %81 = vmatprep.subr.mxu0 0.0
    %82 = vmatpush1.msra.mxu0 %v70
    %83 = vmatprep.subr.mxu0 0.0
    %84 = vmatpush1.msra.mxu0 %v69
    %85 = vmatprep.subr.mxu0 0.0
    %86 = vmatpush1.msra.mxu0 %v68
    %87 = vmatprep.subr.mxu0 0.0
    %88 = vmatpush1.msra.mxu0 %v67
    %89 = vmatprep.subr.mxu0 0.0
    %90 = vmatpush1.msra.mxu0 %v66
    %91 = vmatprep.subr.mxu0 0.0
    %92 = vmatpush1.msra.mxu0 %v65
    %93 = vmatprep.subr.mxu0 0.0
    %94 = vmatpush1.msra.mxu0 %v64
    %95 = vmatprep.subr.mxu0 0.0
    %96 = vmatpush1.msra.mxu0 %v63
    %97 = vmatprep.subr.mxu0 0.0
    %98 = vmatpush1.msra.mxu0 %v62
    %99 = vmatprep.subr.mxu0 0.0
    %100 = vmatpush1.msra.mxu0 %v61
    %101 = vmatprep.subr.mxu0 0.0
    %102 = vmatpush1.msra.mxu0 %v60
    %103 = vmatprep.subr.mxu0 0.0
    %104 = vmatpush1.msra.mxu0 %v59
    %105 = vmatprep.subr.mxu0 0.0
    %106 = vmatpush1.msra.mxu0 %v58
    %107 = vmatprep.subr.mxu0 0.0
    %108 = vmatpush1.msra.mxu0 %v57
    %109 = vmatprep.subr.mxu0 0.0
    %110 = vmatpush1.msra.mxu0 %v56
    %111 = vmatprep.subr.mxu0 0.0
    %112 = vmatpush2.msra.mxu0 0.0
    %113 = vmatprep.subr.mxu0 0.0
    %114 = vmatpush2.msra.mxu0 0.0
    %115 = vmatprep.subr.mxu0 0.0
    %116 = vmatpush2.msra.mxu0 0.0
    %117 = vmatprep.subr.mxu0 0.0
    %118 = vmatpush2.msra.mxu0 0.0
    %119 = vmatprep.subr.mxu0 0.0
    %120 = vmatpush2.msra.mxu0 0.0
    %121 = vmatprep.subr.mxu0 0.0
    %122 = vmatpush2.msra.mxu0 0.0
    %123 = vmatprep.subr.mxu0 0.0
    %124 = vmatpush2.msra.mxu0 0.0
    %125 = vmatprep.subr.mxu0 0.0
    %126 = vmatpush2.msra.mxu0 0.0
    %127 = vmatprep.subr.mxu0 0.0
    %128 = vmatpush2.msra.mxu0 0.0
    %129 = vmatprep.subr.mxu0 0.0
    %130 = vmatpush2.msra.mxu0 0.0
    %131 = vmatprep.subr.mxu0 0.0
    %132 = vmatpush2.msra.mxu0 0.0
    %133 = vmatprep.subr.mxu0 0.0
    %134 = vmatpush2.msra.mxu0 0.0
    %135 = vmatprep.subr.mxu0 0.0
    %136 = vmatpush2.msra.mxu0 0.0
    %137 = vmatprep.subr.mxu0 0.0
    %138 = vmatpush2.msra.mxu0 0.0
    %139 = vmatprep.subr.mxu0 0.0
    %140 = vmatpush2.msra.mxu0 0.0
    %141 = vmatprep.subr.mxu0 0.0
    %142 = vmatpush2.msra.mxu0 0.0
    %143 = vmatprep.mubr.f32.mxu0 0.0
    %144 = vmatmul.mubr.f32.gmra.mxu0 %v54
    %v145 = vpop.f32.mrf.mxu0
    %v146 = vadd.f32 %v77, %v145
    %v147 = vpop.f32.mrf.mxu0
    %148 = vmatprep.mubr.f32.mxu0 0.0
    %149 = vmatmul.mubr.f32.gmra.mxu0 %v55
    %v150 = vpop.f32.mrf.mxu0
    %v151 = vadd.f32 %v77, %v150
    %v152 = vpop.f32.mrf.mxu0
    %153 = vdwg.mxu0
    %v154 = vmul.f32 %v146, 0.5
    %v155 = vmul.f32 %v151, 0.5
    %v156 = vmul.f32 %v146, 0.70710677
    %v157 = vmul.f32 %v151, 0.70710677
    %v158 = verf.f32.pop %v156
    %v159 = verf.f32.pop %v157
    %v160 = vadd.f32 %v158, 1.0
    %v161 = vadd.f32 %v159, 1.0
    %v162 = vmul.f32 %v154, %v160
    %v163 = vmul.f32 %v155, %v161
    %v164 = vld [vmem:[#allocation2] sm:$0xff]
    %v165 = vld [vmem:[#allocation2 + $0x8] sm:$0xff]
    %v166 = vld [vmem:[#allocation5] sm:$0xff]
    %v167 = vld [vmem:[#allocation5 + $0x8] sm:$0xff]
    %v168 = vld [vmem:[#allocation5 + $0x10] sm:$0xff]
    %v169 = vld [vmem:[#allocation5 + $0x18] sm:$0xff]
    %v170 = vld [vmem:[#allocation5 + $0x20] sm:$0xff]
    %v171 = vld [vmem:[#allocation5 + $0x28] sm:$0xff]
    %v172 = vld [vmem:[#allocation5 + $0x30] sm:$0xff]
    %v173 = vld [vmem:[#allocation5 + $0x38] sm:$0xff]
    %v174 = vld [vmem:[#allocation5 + $0x40] sm:$0xff]
    %v175 = vld [vmem:[#allocation5 + $0x48] sm:$0xff]
    %v176 = vld [vmem:[#allocation5 + $0x50] sm:$0xff]
    %v177 = vld [vmem:[#allocation5 + $0x58] sm:$0xff]
    %v178 = vld [vmem:[#allocation5 + $0x60] sm:$0xff]
    %v179 = vld [vmem:[#allocation5 + $0x68] sm:$0xff]
    %v180 = vld [vmem:[#allocation5 + $0x70] sm:$0xff]
    %v181 = vld [vmem:[#allocation5 + $0x78] sm:$0xff]
    %182 = vmatprep.subr.mxu0 0.0
    %183 = vmatpush1.msra.mxu0 %v181
    %184 = vmatprep.subr.mxu0 0.0
    %185 = vmatpush1.msra.mxu0 %v180
    %186 = vmatprep.subr.mxu0 0.0
    %187 = vmatpush1.msra.mxu0 %v179
    %188 = vmatprep.subr.mxu0 0.0
    %189 = vmatpush1.msra.mxu0 %v178
    %190 = vmatprep.subr.mxu0 0.0
    %191 = vmatpush1.msra.mxu0 %v177
    %192 = vmatprep.subr.mxu0 0.0
    %193 = vmatpush1.msra.mxu0 %v176
    %194 = vmatprep.subr.mxu0 0.0
    %195 = vmatpush1.msra.mxu0 %v175
    %196 = vmatprep.subr.mxu0 0.0
    %197 = vmatpush1.msra.mxu0 %v174
    %198 = vmatprep.subr.mxu0 0.0
    %199 = vmatpush1.msra.mxu0 %v173
    %200 = vmatprep.subr.mxu0 0.0
    %201 = vmatpush1.msra.mxu0 %v172
    %202 = vmatprep.subr.mxu0 0.0
    %203 = vmatpush1.msra.mxu0 %v171
    %204 = vmatprep.subr.mxu0 0.0
    %205 = vmatpush1.msra.mxu0 %v170
    %206 = vmatprep.subr.mxu0 0.0
    %207 = vmatpush1.msra.mxu0 %v169
    %208 = vmatprep.subr.mxu0 0.0
    %209 = vmatpush1.msra.mxu0 %v168
    %210 = vmatprep.subr.mxu0 0.0
    %211 = vmatpush1.msra.mxu0 %v167
    %212 = vmatprep.subr.mxu0 0.0
    %213 = vmatpush1.msra.mxu0 %v166
    %214 = vmatprep.subr.mxu0 0.0
    %215 = vmatpush2.msra.mxu0 0.0
    %216 = vmatprep.subr.mxu0 0.0
    %217 = vmatpush2.msra.mxu0 0.0
    %218 = vmatprep.subr.mxu0 0.0
    %219 = vmatpush2.msra.mxu0 0.0
    %220 = vmatprep.subr.mxu0 0.0
    %221 = vmatpush2.msra.mxu0 0.0
    %222 = vmatprep.subr.mxu0 0.0
    %223 = vmatpush2.msra.mxu0 0.0
    %224 = vmatprep.subr.mxu0 0.0
    %225 = vmatpush2.msra.mxu0 0.0
    %226 = vmatprep.subr.mxu0 0.0
    %227 = vmatpush2.msra.mxu0 0.0
    %228 = vmatprep.subr.mxu0 0.0
    %229 = vmatpush2.msra.mxu0 0.0
    %230 = vmatprep.subr.mxu0 0.0
    %231 = vmatpush2.msra.mxu0 0.0
    %232 = vmatprep.subr.mxu0 0.0
    %233 = vmatpush2.msra.mxu0 0.0
    %234 = vmatprep.subr.mxu0 0.0
    %235 = vmatpush2.msra.mxu0 0.0
    %236 = vmatprep.subr.mxu0 0.0
    %237 = vmatpush2.msra.mxu0 0.0
    %238 = vmatprep.subr.mxu0 0.0
    %239 = vmatpush2.msra.mxu0 0.0
    %240 = vmatprep.subr.mxu0 0.0
    %241 = vmatpush2.msra.mxu0 0.0
    %242 = vmatprep.subr.mxu0 0.0
    %243 = vmatpush2.msra.mxu0 0.0
    %244 = vmatprep.subr.mxu0 0.0
    %245 = vmatpush2.msra.mxu0 0.0
    %246 = vmatprep.mubr.f32.mxu0 0.0
    %247 = vmatmul.mubr.f32.gmra.mxu0 %v162
    %v248 = vpop.f32.mrf.mxu0
    %v249 = vadd.f32 0.0, %v248
    %v250 = vpop.f32.mrf.mxu0
    %251 = vmatprep.mubr.f32.mxu0 0.0
    %252 = vmatmul.mubr.f32.gmra.mxu0 %v163
    %v253 = vpop.f32.mrf.mxu0
    %v254 = vadd.f32 0.0, %v253
    %v255 = vpop.f32.mrf.mxu0
    %256 = vdwg.mxu0
    %v257 = vadd.f32 %v164, %v249
    %v258 = vadd.f32 %v165, %v254
    %259 = vst [vmem:[#allocation2] sm:$0xff] %v257
    %260 = vst [vmem:[#allocation2 + $0x8] sm:$0xff] %v258
    // Predicated region
    $region34: #{fn.1} parent=1 // pred_check
      %p261 = pneg %p48
    $region35: #{fn.1} parent=1 // pred_check_branch
      %263 = sbr.rel (%p261) target = $region37
    $region36: #{fn.1} parent=1 // pred_region
      %v264 = vld [vmem:[#allocation2] sm:$0xff]
      %v265 = vld [vmem:[#allocation2 + $0x8] sm:$0xff]
      %v266 = vld [vmem:[%s4] sm:$0x1]
      %v268 = vlaneseq
      %v269 = vshrl.u32 %v268, 7
      %v270 = vsub.s32 0, %v269
      %v271 = vrot.slane %v266, %v270
      %v273 = vadd.f32 %v264, %v271
      %v274 = vadd.f32 %v265, %v271
      %275 = vst [vmem:[%s5] sm:$0xff] %v273
      %276 = vst [vmem:[%s5 + $0x8] sm:$0xff] %v274
    $region37: #{fn.1} parent=1 // pred_fallthru
      _
    // Predicated region
    $region38: #{fn.1} parent=1 // pred_check
      _
    $region39: #{fn.1} parent=1 // pred_check_branch
      %278 = sbr.rel (0) target = $region41
    $region40: #{fn.1} parent=1 // pred_region
      _
    $region41: #{fn.1} parent=1 // pred_fallthru
      _
    // Predicated region
    $region42: #{fn.1} parent=1 // pred_check
      _
    $region43: #{fn.1} parent=1 // pred_check_branch
      %280 = sbr.rel (0) target = $region45
    $region44: #{fn.1} parent=1 // pred_region
      _
    $region45: #{fn.1} parent=1 // pred_fallthru
      _
    %281 = vsyncpa [#allocation4], 1
    %282 = vsyncpa [#allocation6], 1

</llo_original>
